<compile_context>
chip_gen: v5e
topology: v5e:2x2
jax: 0.10.0
libtpu: 0.0.40
codegen_flags: <defaults>
</compile_context>

<pallas_src>
import jax
import jax.numpy as jnp
from jax.experimental import pallas as pl
from jax.experimental.pallas import tpu as pltpu


# ----------------------------------------------------------------------------- helpers

def _round_up(a, m):
    return ((a + m - 1) // m) * m


def _vmem_budget_bytes():
    """Usable scoped-VMEM budget: physical capacity minus headroom for
    compiler-internal scratch/semaphores (v7x=64 MiB, v5e/v6e=128 MiB)."""
    try:
        cap = int(pltpu.get_tpu_info().vmem_capacity_bytes)
    except Exception:
        cap = 64 << 20  # conservative (v7x-sized) fallback
    return max(cap - (12 << 20), 16 << 20)


def _estimate_vmem(tb, tn, dim_in, dim_ctx, dim_out_p, out_itemsize):
    streamed = 2 * (dim_in * tn * 2              # Wl tile (bf16, double-buffered)
                    + dim_out_p * 2 * tn * 2     # [Wg|Wb] tile (bf16, double-buffered)
                    + tn * 4 + 2 * tn * 4)       # bias tiles (f32)
    resident = (dim_ctx * dim_out_p * 2 + dim_out_p * 4   # Wr / br  (Buffered(1))
                + tb * dim_in * 2 + tb * dim_ctx * 2)      # x / c    (Buffered(1))
    out_tile = 2 * tb * tn * out_itemsize
    scratch = tb * dim_out_p * 2                           # bf16 cr scratch
    return streamed + resident + out_tile + scratch + (4 << 20)  # headroom


def _pick_tn(dim_out_p, dim_in, dim_ctx, vmem_budget):
    # Prefer wide, 256-granular tiles (fills the v6e/v7x 256x256 MXU, fewer grid
    # steps); fall back to 128 when VMEM-bound. dim_out_p is a multiple of 128,
    # so the result is always lane-dense.
    for tn in (1024, 512, 256, 128):
        if dim_out_p % tn:
            continue
        if _estimate_vmem(256, tn, dim_in, dim_ctx, dim_out_p, 4) <= vmem_budget:
            return tn
    return 128


def _pick_tb(B):
    if B <= 16:
        return B  # full-extent batch block, no padding
    # >=2 batch tiles so the 'parallel' batch axis gives v7x's second TensorCore
    # work; cap at 256 rows (fills MXU rows, bounds the cr scratch). Multiple of
    # 16 for bf16 sublane packing; caller pads B up to a multiple of tb.
    half = _round_up((B + 1) // 2, 16)
    return min(256, half)


# ----------------------------------------------------------------------------- kernel

def dffl_kernel(x_ref, c_ref,
                wl_ref, bl_ref,
                wr_ref, br_ref,
                wgb_ref, bgb_ref,
                out_ref, cr_ref):
    tn = out_ref.shape[-1]

    # Shared cr = relu(c @ Wr + br): computed once per batch block (the feature
    # axis j is the inner, sequentially iterated 'arbitrary' grid axis) into a
    # bf16 VMEM scratch and reused for every feature tile.
    @pl.when(pl.program_id(1) == 0)
    def _():
        cr = jnp.dot(c_ref[...], wr_ref[...], preferred_element_type=jnp.float32)
        cr_ref[...] = jnp.maximum(cr + br_ref[...], 0.0).astype(cr_ref.dtype)

    # xl = x @ Wl + bl for this feature tile.
    xl = jnp.dot(x_ref[...], wl_ref[...],
                 preferred_element_type=jnp.float32) + bl_ref[...]

    # Fused gamma/beta head: one matmul against the [dim_out, 2*tn] block
    # [Wg_j | Wb_j]; split with free, lane-aligned static slices.
    gb = jnp.dot(cr_ref[...], wgb_ref[...],
                 preferred_element_type=jnp.float32) + bgb_ref[...]
    gamma = gb[:, :tn]
    beta = gb[:, tn:]

    out_ref[...] = (gamma * xl + beta).astype(out_ref.dtype)


# ----------------------------------------------------------------------------- wrapper

def prepare_params(params, *, tn=None):
    """One-time parameter preparation (hoisted out of the per-call path).

    Pads dim_out to a lane-dense multiple of 128, casts weights to bf16, and
    rearranges gamma/beta weights into a single [dim_out, 2*dim_out] matrix
    whose j-th 2*tn-wide block is [Wg_j | Wb_j] (same for the biases).
    """
    dim_in, dim_out = params["wl"].shape
    dim_ctx = params["wr"].shape[0]
    dim_out_p = _round_up(dim_out, 128)
    pad = dim_out_p - dim_out

    if tn is None:
        tn = _pick_tn(dim_out_p, dim_in, dim_ctx, _vmem_budget_bytes())
    if dim_out_p % tn != 0:
        raise ValueError(f"tn={tn} must divide padded dim_out={dim_out_p}")

    bf, f32 = jnp.bfloat16, jnp.float32

    def pc(a):  # pad output (last) dim with zeros
        return jnp.pad(a, ((0, 0), (0, pad))) if pad else a

    def pr(a):  # pad input (first) dim with zeros
        return jnp.pad(a, ((0, pad), (0, 0))) if pad else a

    wl = pc(params["wl"]).astype(bf)
    bl = pc(params["bl"]).astype(f32)
    wr = pc(params["wr"]).astype(bf)
    br = pc(params["br"]).astype(f32)
    wg = pc(pr(params["wg"])).astype(bf)
    wb = pc(pr(params["wb"])).astype(bf)
    bg = pc(params["bg"]).astype(f32)
    bb = pc(params["bb"]).astype(f32)

    nt = dim_out_p // tn
    wgb = jnp.concatenate([wg.reshape(dim_out_p, nt, tn),
                           wb.reshape(dim_out_p, nt, tn)],
                          axis=2).reshape(dim_out_p, 2 * dim_out_p)
    bgb = jnp.concatenate([bg.reshape(1, nt, tn),
                           bb.reshape(1, nt, tn)],
                          axis=2).reshape(1, 2 * dim_out_p)

    return dict(wl=wl, bl=bl, wr=wr, br=br, wgb=wgb, bgb=bgb,
                dim_in=dim_in, dim_ctx=dim_ctx,
                dim_out=dim_out, dim_out_p=dim_out_p, tn=tn)


def dffl_forward(x, c, prepared, *, tb=None, out_dtype=jnp.float32):
    B, dim_in = x.shape
    _, dim_ctx = c.shape
    assert dim_in == prepared["dim_in"] and dim_ctx == prepared["dim_ctx"]
    dim_out = prepared["dim_out"]
    dim_out_p = prepared["dim_out_p"]
    tn = prepared["tn"]

    if tb is None:
        tb = _pick_tb(B)
    Bp = _round_up(B, tb)

    bf = jnp.bfloat16
    xb = x.astype(bf)
    cb = c.astype(bf)
    if Bp != B:
        xb = jnp.pad(xb, ((0, Bp - B), (0, 0)))
        cb = jnp.pad(cb, ((0, Bp - B), (0, 0)))

    nb = Bp // tb
    nt = dim_out_p // tn
    out_itemsize = jnp.dtype(out_dtype).itemsize

    budget = _vmem_budget_bytes()
    vmem_bytes = _estimate_vmem(tb, tn, dim_in, dim_ctx, dim_out_p, out_itemsize)
    vmem_bytes = int(min(max(vmem_bytes, 16 << 20), budget))

    flops = 2 * Bp * (dim_in + dim_ctx + 2 * dim_out_p) * dim_out_p
    bytes_accessed = int(
        2 * (nb * (dim_in * dim_out_p + 2 * dim_out_p * dim_out_p)   # bf16 streamed weights
             + dim_ctx * dim_out_p)                                   # Wr once
        + 2 * Bp * (dim_in + dim_ctx)                                 # bf16 inputs
        + 4 * 4 * dim_out_p                                           # f32 biases
        + out_itemsize * Bp * dim_out_p)                              # output

    grid_spec = pltpu.PrefetchScalarGridSpec(
        num_scalar_prefetch=0,
        grid=(nb, nt),
        in_specs=[
            pl.BlockSpec((tb, dim_in), lambda b, j: (b, 0),
                         pipeline_mode=pl.Buffered(1)),                 # x (invariant over j)
            pl.BlockSpec((tb, dim_ctx), lambda b, j: (b, 0),
                         pipeline_mode=pl.Buffered(1)),                 # c (invariant over j)
            pl.BlockSpec((dim_in, tn), lambda b, j: (0, j)),            # Wl tile (streamed)
            pl.BlockSpec((1, tn), lambda b, j: (0, j)),                 # bl tile
            pl.BlockSpec((dim_ctx, dim_out_p), lambda b, j: (0, 0),
                         pipeline_mode=pl.Buffered(1)),                 # Wr (grid-invariant)
            pl.BlockSpec((1, dim_out_p), lambda b, j: (0, 0),
                         pipeline_mode=pl.Buffered(1)),                 # br (grid-invariant)
            pl.BlockSpec((dim_out_p, 2 * tn), lambda b, j: (0, j)),     # fused [Wg|Wb] tile
            pl.BlockSpec((1, 2 * tn), lambda b, j: (0, j)),             # fused [bg|bb] tile
        ],
        out_specs=pl.BlockSpec((tb, tn), lambda b, j: (b, j)),
        scratch_shapes=[pltpu.VMEM((tb, dim_out_p), jnp.bfloat16)],     # cr scratch (bf16)
    )

    out = pl.pallas_call(
        dffl_kernel,
        out_shape=jax.ShapeDtypeStruct((Bp, dim_out_p), out_dtype),
        grid_spec=grid_spec,
        compiler_params=pltpu.CompilerParams(
            # The feature axis j MUST stay 'arbitrary' (iterated sequentially per
            # batch block): the cr scratch written at j==0 is reused for j>0.
            dimension_semantics=("parallel", "arbitrary"),
            vmem_limit_bytes=vmem_bytes,
        ),
        cost_estimate=pl.CostEstimate(flops=flops, transcendentals=0,
                                      bytes_accessed=bytes_accessed),
    )(xb, cb, prepared["wl"], prepared["bl"], prepared["wr"], prepared["br"],
      prepared["wgb"], prepared["bgb"])

    if Bp != B or dim_out_p != dim_out:
        out = out[:B, :dim_out]
    return out


# ----------------------------------------------------------------------------- init / reference

def init_params(key, dim_in, dim_ctx, dim_out):
    """Deterministic synthetic init mirroring DFFL.__init__ / reset_parameters."""
    k1, k2 = jax.random.split(key, 2)

    def uniform_linear(k, fan_in, fan_out):
        bound = 1.0 / jnp.sqrt(jnp.float32(fan_in))
        kw, kb = jax.random.split(k)
        w = jax.random.uniform(kw, (fan_in, fan_out), jnp.float32, -bound, bound)
        b = jax.random.uniform(kb, (1, fan_out), jnp.float32, -bound, bound)
        return w, b

    wl, bl = uniform_linear(k1, dim_in, dim_out)     # self._layer
    wr, br = uniform_linear(k2, dim_ctx, dim_out)    # self.reduce[0]

    # reset_parameters(): gamma.weight=0, gamma.bias=1; beta.weight=0, beta.bias=0
    wg = jnp.zeros((dim_out, dim_out), jnp.float32)
    bg = jnp.ones((1, dim_out), jnp.float32)
    wb = jnp.zeros((dim_out, dim_out), jnp.float32)
    bb = jnp.zeros((1, dim_out), jnp.float32)

    return dict(wl=wl, bl=bl, wr=wr, br=br, wg=wg, bg=bg, wb=wb, bb=bb)


def dffl_reference(x, c, p):
    """f32-accumulating reference using the same bf16-cast operands as the kernel."""
    bf = jnp.bfloat16
    xb, cb = x.astype(bf), c.astype(bf)
    xl = jnp.dot(xb, p["wl"].astype(bf), preferred_element_type=jnp.float32) + p["bl"]
    cr = jnp.maximum(
        jnp.dot(cb, p["wr"].astype(bf), preferred_element_type=jnp.float32) + p["br"], 0.0)
    crb = cr.astype(bf)
    gamma = jnp.dot(crb, p["wg"].astype(bf), preferred_element_type=jnp.float32) + p["bg"]
    beta = jnp.dot(crb, p["wb"].astype(bf), preferred_element_type=jnp.float32) + p["bb"]
    return gamma * xl + beta


# ----------------------------------------------------------------------------- demo

if __name__ == "__main__":
    B, dim_in, dim_ctx, dim_out = 8, 32, 16, 256

    key = jax.random.PRNGKey(0)
    kx, kc, kp, kx2, kc2 = jax.random.split(key, 5)

    x = jax.random.normal(kx, (B, dim_in), jnp.float32)
    c = jax.random.normal(kc, (B, dim_ctx), jnp.float32)
    params = init_params(kp, dim_in, dim_ctx, dim_out)

    # One-time parameter prep (hoisted out of the per-call path).
    # tn=128 -> 2 feature tiles at this toy size, exercising the grid,
    # the pl.when cr-scratch path, and the streamed [Wg|Wb] tiles.
    prepared = prepare_params(params, tn=128)
    out = jax.block_until_ready(dffl_forward(x, c, prepared))
    ref = dffl_reference(x, c, params)
    assert out.shape == (B, dim_out)
    assert jnp.allclose(out, ref, atol=2e-2, rtol=2e-2), "mismatch vs JAX reference"

    # Second config: exercises batch tiling + padding (B=40 -> tb=32, padded to
    # 64, nb=2 for the 'parallel' megacore axis) and device-aware tn selection.
    B2 = 40
    x2 = jax.random.normal(kx2, (B2, dim_in), jnp.float32)
    c2 = jax.random.normal(kc2, (B2, dim_ctx), jnp.float32)
    prepared2 = prepare_params(params)
    out2 = jax.block_until_ready(dffl_forward(x2, c2, prepared2))
    ref2 = dffl_reference(x2, c2, params)
    assert out2.shape == (B2, dim_out)
    assert jnp.allclose(out2, ref2, atol=2e-2, rtol=2e-2), "mismatch (tiled batch)"

    print("KERNEL_OK")
</pallas_src>

<mosaic_0001>
module attributes {stable_mosaic.version = 11 : i64} {
  func.func @dffl_kernel(%arg0: i32, %arg1: i32, %arg2: memref<8x32xbf16, #tpu.memory_space<vmem>>, %arg3: memref<8x16xbf16, #tpu.memory_space<vmem>>, %arg4: memref<32x128xbf16, #tpu.memory_space<vmem>>, %arg5: memref<1x128xf32, #tpu.memory_space<vmem>>, %arg6: memref<16x256xbf16, #tpu.memory_space<vmem>>, %arg7: memref<1x256xf32, #tpu.memory_space<vmem>>, %arg8: memref<256x256xbf16, #tpu.memory_space<vmem>>, %arg9: memref<1x256xf32, #tpu.memory_space<vmem>>, %arg10: memref<8x128xf32, #tpu.memory_space<vmem>>, %arg11: memref<8x256xbf16, #tpu.memory_space<vmem>>) attributes {dimension_semantics = [#tpu.dimension_semantics<parallel>, #tpu.dimension_semantics<arbitrary>], iteration_bounds = array<i64: 1, 2>, scalar_prefetch = 0 : i64, scratch_operands = 1 : i64, tpu.core_type = #tpu.core_type<tc>, window_params = [{pipeline_mode = #tpu.pipeline_mode<synchronous>, transform_indices = @transform_0, window_bounds = array<i64: 8, 32>}, {pipeline_mode = #tpu.pipeline_mode<synchronous>, transform_indices = @transform_1, window_bounds = array<i64: 8, 16>}, {transform_indices = @transform_2, window_bounds = array<i64: 32, 128>}, {transform_indices = @transform_3, window_bounds = array<i64: 1, 128>}, {pipeline_mode = #tpu.pipeline_mode<synchronous>, transform_indices = @transform_4, window_bounds = array<i64: 16, 256>}, {pipeline_mode = #tpu.pipeline_mode<synchronous>, transform_indices = @transform_5, window_bounds = array<i64: 1, 256>}, {transform_indices = @transform_6, window_bounds = array<i64: 256, 256>}, {transform_indices = @transform_7, window_bounds = array<i64: 1, 256>}, {transform_indices = @transform_8, window_bounds = array<i64: 8, 128>}]} {
    %c0_i32 = arith.constant 0 : i32
    %0 = arith.cmpi eq, %arg1, %c0_i32 : i32
    %1 = arith.extui %0 : i1 to i32
    %c0_i32_0 = arith.constant 0 : i32
    %2 = arith.cmpi ne, %1, %c0_i32_0 : i32
    scf.if %2 {
      %c0_15 = arith.constant 0 : index
      %c0_16 = arith.constant 0 : index
      %20 = vector.load %arg3[%c0_15, %c0_16] : memref<8x16xbf16, #tpu.memory_space<vmem>>, vector<8x16xbf16>
      %c0_17 = arith.constant 0 : index
      %c0_18 = arith.constant 0 : index
      %21 = vector.load %arg6[%c0_17, %c0_18] : memref<16x256xbf16, #tpu.memory_space<vmem>>, vector<16x256xbf16>
      %cst_19 = arith.constant dense<0.000000e+00> : vector<8x256xf32>
      %22 = tpu.matmul %20, %21, %cst_19 {dimension_numbers = #tpu.dot_dimension_numbers<[1], [0], [0], [1], [0, 0, 1, 1], [], []>} : vector<8x16xbf16>, vector<16x256xbf16>, vector<8x256xf32> -> vector<8x256xf32>
      %c0_20 = arith.constant 0 : index
      %c0_21 = arith.constant 0 : index
      %23 = vector.load %arg7[%c0_20, %c0_21] : memref<1x256xf32, #tpu.memory_space<vmem>>, vector<1x256xf32>
      %24 = vector.broadcast %23 : vector<1x256xf32> to vector<8x256xf32>
      %25 = arith.addf %22, %24 : vector<8x256xf32>
      %cst_22 = arith.constant 0.000000e+00 : f32
      %26 = vector.broadcast %cst_22 : f32 to vector<8x256xf32>
      %27 = arith.maximumf %25, %26 : vector<8x256xf32>
      %28 = arith.truncf %27 : vector<8x256xf32> to vector<8x256xbf16>
      %c0_23 = arith.constant 0 : index
      %c0_24 = arith.constant 0 : index
      %29 = vector.load %arg11[%c0_23, %c0_24] : memref<8x256xbf16, #tpu.memory_space<vmem>>, vector<8x256xbf16>
      tpu.vector_store %arg11[%c0_23, %c0_24], %28 {strides = array<i32>} : memref<8x256xbf16, #tpu.memory_space<vmem>>, vector<8x256xbf16>,
    } else {
    }
    %c0 = arith.constant 0 : index
    %c0_1 = arith.constant 0 : index
    %3 = vector.load %arg2[%c0, %c0_1] : memref<8x32xbf16, #tpu.memory_space<vmem>>, vector<8x32xbf16>
    %c0_2 = arith.constant 0 : index
    %c0_3 = arith.constant 0 : index
    %4 = vector.load %arg4[%c0_2, %c0_3] : memref<32x128xbf16, #tpu.memory_space<vmem>>, vector<32x128xbf16>
    %cst = arith.constant dense<0.000000e+00> : vector<8x128xf32>
    %5 = tpu.matmul %3, %4, %cst {dimension_numbers = #tpu.dot_dimension_numbers<[1], [0], [0], [1], [0, 0, 1, 1], [], []>} : vector<8x32xbf16>, vector<32x128xbf16>, vector<8x128xf32> -> vector<8x128xf32>
    %c0_4 = arith.constant 0 : index
    %c0_5 = arith.constant 0 : index
    %6 = vector.load %arg5[%c0_4, %c0_5] : memref<1x128xf32, #tpu.memory_space<vmem>>, vector<1x128xf32>
    %7 = vector.broadcast %6 : vector<1x128xf32> to vector<8x128xf32>
    %8 = arith.addf %5, %7 : vector<8x128xf32>
    %c0_6 = arith.constant 0 : index
    %c0_7 = arith.constant 0 : index
    %9 = vector.load %arg11[%c0_6, %c0_7] : memref<8x256xbf16, #tpu.memory_space<vmem>>, vector<8x256xbf16>
    %c0_8 = arith.constant 0 : index
    %c0_9 = arith.constant 0 : index
    %10 = vector.load %arg8[%c0_8, %c0_9] : memref<256x256xbf16, #tpu.memory_space<vmem>>, vector<256x256xbf16>
    %cst_10 = arith.constant dense<0.000000e+00> : vector<8x256xf32>
    %11 = tpu.matmul %9, %10, %cst_10 {dimension_numbers = #tpu.dot_dimension_numbers<[1], [0], [0], [1], [0, 0, 1, 1], [], []>} : vector<8x256xbf16>, vector<256x256xbf16>, vector<8x256xf32> -> vector<8x256xf32>
    %c0_11 = arith.constant 0 : index
    %c0_12 = arith.constant 0 : index
    %12 = vector.load %arg9[%c0_11, %c0_12] : memref<1x256xf32, #tpu.memory_space<vmem>>, vector<1x256xf32>
    %13 = vector.broadcast %12 : vector<1x256xf32> to vector<8x256xf32>
    %14 = arith.addf %11, %13 : vector<8x256xf32>
    %15 = vector.extract_strided_slice %14 {offsets = [0, 0], sizes = [8, 128], strides = [1, 1]} : vector<8x256xf32> to vector<8x128xf32>
    %16 = vector.extract_strided_slice %14 {offsets = [0, 128], sizes = [8, 128], strides = [1, 1]} : vector<8x256xf32> to vector<8x128xf32>
    %17 = arith.mulf %15, %8 : vector<8x128xf32>
    %18 = arith.addf %17, %16 : vector<8x128xf32>
    %c0_13 = arith.constant 0 : index
    %c0_14 = arith.constant 0 : index
    %19 = vector.load %arg10[%c0_13, %c0_14] : memref<8x128xf32, #tpu.memory_space<vmem>>, vector<8x128xf32>
    tpu.vector_store %arg10[%c0_13, %c0_14], %18 {strides = array<i32>} : memref<8x128xf32, #tpu.memory_space<vmem>>, vector<8x128xf32>,
    return
  }
  func.func @transform_0(%arg0: i32, %arg1: i32) -> (i32, i32) {
    %c0_i32 = arith.constant 0 : i32
    %c0_i32_0 = arith.constant 0 : i32
    return %arg0, %c0_i32 : i32, i32
  }
  func.func @transform_1(%arg0: i32, %arg1: i32) -> (i32, i32) {
    %c0_i32 = arith.constant 0 : i32
    %c0_i32_0 = arith.constant 0 : i32
    return %arg0, %c0_i32 : i32, i32
  }
  func.func @transform_2(%arg0: i32, %arg1: i32) -> (i32, i32) {
    %c0_i32 = arith.constant 0 : i32
    %c0_i32_0 = arith.constant 0 : i32
    return %c0_i32, %arg1 : i32, i32
  }
  func.func @transform_3(%arg0: i32, %arg1: i32) -> (i32, i32) {
    %c0_i32 = arith.constant 0 : i32
    %c0_i32_0 = arith.constant 0 : i32
    return %c0_i32, %arg1 : i32, i32
  }
  func.func @transform_4(%arg0: i32, %arg1: i32) -> (i32, i32) {
    %c0_i32 = arith.constant 0 : i32
    %c0_i32_0 = arith.constant 0 : i32
    %c0_i32_1 = arith.constant 0 : i32
    return %c0_i32, %c0_i32_0 : i32, i32
  }
  func.func @transform_5(%arg0: i32, %arg1: i32) -> (i32, i32) {
    %c0_i32 = arith.constant 0 : i32
    %c0_i32_0 = arith.constant 0 : i32
    %c0_i32_1 = arith.constant 0 : i32
    return %c0_i32, %c0_i32_0 : i32, i32
  }
  func.func @transform_6(%arg0: i32, %arg1: i32) -> (i32, i32) {
    %c0_i32 = arith.constant 0 : i32
    %c0_i32_0 = arith.constant 0 : i32
    return %c0_i32, %arg1 : i32, i32
  }
  func.func @transform_7(%arg0: i32, %arg1: i32) -> (i32, i32) {
    %c0_i32 = arith.constant 0 : i32
    %c0_i32_0 = arith.constant 0 : i32
    return %c0_i32, %arg1 : i32, i32
  }
  func.func @transform_8(%arg0: i32, %arg1: i32) -> (i32, i32) {
    %c0_i32 = arith.constant 0 : i32
    return %arg0, %arg1 : i32, i32
  }
}

</mosaic_0001>

<llo_original>
// kernel: tpu_custom_call.1
$region0: #{tpu_custom_call.1}
  #allocation0 [shape = 'u32[]', space=smem, size = 0x4, offset = 0x4, fixed_abs, tag = 'smem constant byte address 0x4 - core index']
  #allocation1 [shape = 'u32[72,128]{1,0:T(1,128)}', space=vmem, size = 0x9000, scoped, tag = 'internal scratch']
  #allocation2 [shape = 'bf16[8,256]{1,0:T(8,128)(2,1)}', space=vmem, size = 0x1000, scoped, tag = 'scratch operand']
  %s0 = inlined_call_operand.hbm [shape: bf16[8,32], index: 0, kind: input, shape index: {}]
  %s1 = inlined_call_operand.hbm [shape: bf16[8,16], index: 1, kind: input, shape index: {}]
  %s2 = inlined_call_operand.hbm [shape: bf16[32,256], index: 2, kind: input, shape index: {}]
  %s3 = inlined_call_operand.vmem [shape: f32[1,256], index: 3, kind: input, shape index: {}]
  %s4 = inlined_call_operand.hbm [shape: bf16[16,256], index: 4, kind: input, shape index: {}]
  %s5 = inlined_call_operand.hbm [shape: f32[1,256], index: 5, kind: input, shape index: {}]
  %s6 = inlined_call_operand.hbm [shape: bf16[256,512], index: 6, kind: input, shape index: {}]
  %s7 = inlined_call_operand.vmem [shape: f32[1,512], index: 7, kind: input, shape index: {}]
  %s8 = inlined_call_operand.hbm [shape: f32[8,256], index: 8, kind: output, shape index: {}]
  %s9 = sld [smem:[#allocation0]]
  $region93: #{tpu_custom_call.1} parent=0
    _
  %s11 = ssub.s32 1, %s9
  %s12 = scalar_select 0, %s11, %s9
  $region1: #{tpu_custom_call.1} parent=0
    #allocation3 [shape = 'u8[2048]{0}', space=vmem, size = 0x800, scoped, tag = 'input window, operand 0, single buffered']
    #allocation4 [shape = 's32[2]{0}', space=sflag, size = 0x8, scoped, tag = 'scoped memory for tpu_custom_call.1']
    #allocation5 [shape = 's32[2]{0}', space=sflag, size = 0x8, scoped, tag = 'scoped memory for tpu_custom_call.1']
    #allocation6 [shape = 'u8[2048]{0}', space=vmem, size = 0x800, scoped, tag = 'input window, operand 1, single buffered']
    #allocation7 [shape = 's32[1]{0}', space=sflag, size = 0x4, scoped, tag = 'scoped memory for tpu_custom_call.1']
    #allocation8 [shape = 'u8[16384]{0}', space=vmem, size = 0x4000, scoped, tag = 'input window, operand 2']
    #allocation9 [shape = 'u8[8192]{0}', space=vmem, size = 0x2000, scoped, tag = 'input window, operand 4, single buffered']
    #allocation10 [shape = 'u8[1024]{0}', space=vmem, size = 0x400, scoped, tag = 'input window, operand 5, single buffered']
    #allocation11 [shape = 's32[1]{0}', space=sflag, size = 0x4, scoped, tag = 'scoped memory for tpu_custom_call.1']
    #allocation12 [shape = 'u8[262144]{0}', space=vmem, size = 0x40000, scoped, tag = 'input window, operand 6']
    #allocation13 [shape = 'u8[8192]{0}', space=vmem, size = 0x2000, scoped, tag = 'output window, operand 0']
    %13 = vsyncpa [#allocation4], 0
    %14 = vsyncpa [#allocation7], 0
    %15 = vsyncpa [#allocation11], 0
    %16 = vsyncpa [#allocation5], 0
    %s17 = scalar_lea.sflag [#allocation5], 1
    %18 = vsyncpa %s17, 0
    loop: start=0, step=1, limit=4
    $region2: #{tpu_custom_call.1} parent=1 // loop_pre_header
      _
    $region3: #{tpu_custom_call.1} parent=1 // loop_header
      %s20 = sphi 0, %s24
      %p21 = scmp.ge.s32.totalorder %s20, 4
      %s27 = sphi 0, %s39
      %s28 = sphi 0, %s35
      %s29 = sphi 0, %s27
      %s30 = sphi 0, %s28
      %s31 = sphi 0, %s29
      %s32 = sphi 0, %s30
      %s42 = sphi 0, %s44
      %s45 = sphi 0, %s42
      %s46 = sphi 0, %s45
      %s62 = sphi 0, %s46
      %s68 = sphi 0, %s70
      %s71 = sphi 0, %s68
      %s72 = sphi 0, %s71
      %s88 = sphi 0, %s72
      %s94 = sphi 0, %s96
      %s97 = sphi 0, %s94
      %s98 = sphi 0, %s97
      %s114 = sphi 0, %s98
      %s120 = sphi 0, %s122
      %s123 = sphi 0, %s120
      %s124 = sphi 0, %s123
      %s140 = sphi 0, %s124
      %s144 = sphi 0, %s144
      %s146 = sphi 0, %s144
      %s147 = sphi 0, %s146
      %s161 = sphi 0, %s147
      %s165 = sphi 0, %s165
      %s167 = sphi 0, %s165
      %s168 = sphi 0, %s167
      %s182 = sphi 0, %s168
      %s188 = sphi 0, %s190
      %s191 = sphi 0, %s188
      %s192 = sphi 0, %s191
      %s208 = sphi 0, %s192
      %s214 = sphi 0, %s216
      %s217 = sphi 0, %s214
      %s218 = sphi 0, %s217
      %s234 = sphi 0, %s218
      %s242 = sphi 0, %s244
      %s245 = sphi 0, %s242
      %s246 = sphi 0, %s245
      %s262 = sphi 0, %s246
    $region4: #{tpu_custom_call.1} parent=1 // loop_header_branch
      %23 = sbr.rel (%p21) target = $region8
    $region5: #{tpu_custom_call.1} parent=1 // loop_body
      %s25 = ssub.s32 %s20, 1
      %s26 = ssub.s32 %s20, 2
      %s33 = sadd.s32 1, %s28
      %p34 = scmp.ge.s32.totalorder %s33, 2
      %s35 = scalar_select %p34, 0, %s33
      %s36 = sadd.s32 1, %s27
      %s37 = scalar_select %p34, %s36, %s27
      %p38 = scmp.ge.s32.totalorder %s37, 1
      %s39 = scalar_select %p38, 0, %s37
      %s40 = ssub.s32 %s27, %s39
      %p41 = scmp.eq.s32.totalorder %s40, 0
      %s43 = sadd.s32 %s42, 1
      %s44 = scalar_select %p41, %s42, %s43
      %p47 = pneg %p41
      %p48 = scmp.eq.s32.totalorder %s20, 1
      %p49 = por %p47, %p48
      %p50 = scmp.ne.s32.totalorder %s42, %s45
      %p51 = scmp.eq.s32.totalorder %s20, 0
      %p52 = por %p50, %p51
      %p53 = scmp.ne.s32.totalorder %s42, %s45
      %p54 = scmp.eq.s32.totalorder %s25, 1
      %p55 = por %p53, %p54
      %p56 = scmp.ne.s32.totalorder %s45, %s46
      %p57 = scmp.eq.s32.totalorder %s25, 0
      %p58 = por %p56, %p57
      %p59 = scmp.ne.s32.totalorder %s45, %s46
      %p60 = scmp.eq.s32.totalorder %s26, 1
      %p61 = por %p59, %p60
      %p63 = scmp.ne.s32.totalorder %s46, %s62
      %p64 = scmp.eq.s32.totalorder %s26, 0
      %p65 = por %p63, %p64
      %s66 = ssub.s32 %s27, %s39
      %p67 = scmp.eq.s32.totalorder %s66, 0
      %s69 = sadd.s32 %s68, 1
      %s70 = scalar_select %p67, %s68, %s69
      %p73 = pneg %p67
      %p74 = scmp.eq.s32.totalorder %s20, 1
      %p75 = por %p73, %p74
      %p76 = scmp.ne.s32.totalorder %s68, %s71
      %p77 = scmp.eq.s32.totalorder %s20, 0
      %p78 = por %p76, %p77
      %p79 = scmp.ne.s32.totalorder %s68, %s71
      %p80 = scmp.eq.s32.totalorder %s25, 1
      %p81 = por %p79, %p80
      %p82 = scmp.ne.s32.totalorder %s71, %s72
      %p83 = scmp.eq.s32.totalorder %s25, 0
      %p84 = por %p82, %p83
      %p85 = scmp.ne.s32.totalorder %s71, %s72
      %p86 = scmp.eq.s32.totalorder %s26, 1
      %p87 = por %p85, %p86
      %p89 = scmp.ne.s32.totalorder %s72, %s88
      %p90 = scmp.eq.s32.totalorder %s26, 0
      %p91 = por %p89, %p90
      %s92 = ssub.s32 %s28, %s35
      %p93 = scmp.eq.s32.totalorder %s92, 0
      %s95 = sadd.s32 %s94, 1
      %s96 = scalar_select %p93, %s94, %s95
      %p99 = pneg %p93
      %p100 = scmp.eq.s32.totalorder %s20, 1
      %p101 = por %p99, %p100
      %p102 = scmp.ne.s32.totalorder %s94, %s97
      %p103 = scmp.eq.s32.totalorder %s20, 0
      %p104 = por %p102, %p103
      %p105 = scmp.ne.s32.totalorder %s94, %s97
      %p106 = scmp.eq.s32.totalorder %s25, 1
      %p107 = por %p105, %p106
      %p108 = scmp.ne.s32.totalorder %s97, %s98
      %p109 = scmp.eq.s32.totalorder %s25, 0
      %p110 = por %p108, %p109
      %p111 = scmp.ne.s32.totalorder %s97, %s98
      %p112 = scmp.eq.s32.totalorder %s26, 1
      %p113 = por %p111, %p112
      %p115 = scmp.ne.s32.totalorder %s98, %s114
      %p116 = scmp.eq.s32.totalorder %s26, 0
      %p117 = por %p115, %p116
      %s118 = ssub.s32 %s28, %s35
      %p119 = scmp.eq.s32.totalorder %s118, 0
      %s121 = sadd.s32 %s120, 1
      %s122 = scalar_select %p119, %s120, %s121
      %p125 = pneg %p119
      %p126 = scmp.eq.s32.totalorder %s20, 1
      %p127 = por %p125, %p126
      %p128 = scmp.ne.s32.totalorder %s120, %s123
      %p129 = scmp.eq.s32.totalorder %s20, 0
      %p130 = por %p128, %p129
      %p131 = scmp.ne.s32.totalorder %s120, %s123
      %p132 = scmp.eq.s32.totalorder %s25, 1
      %p133 = por %p131, %p132
      %p134 = scmp.ne.s32.totalorder %s123, %s124
      %p135 = scmp.eq.s32.totalorder %s25, 0
      %p136 = por %p134, %p135
      %p137 = scmp.ne.s32.totalorder %s123, %s124
      %p138 = scmp.eq.s32.totalorder %s26, 1
      %p139 = por %p137, %p138
      %p141 = scmp.ne.s32.totalorder %s124, %s140
      %p142 = scmp.eq.s32.totalorder %s26, 0
      %p143 = por %p141, %p142
      %s145 = sadd.s32 %s144, 1
      %p148 = scmp.eq.s32.totalorder %s20, 1
      %p149 = scmp.ne.s32.totalorder %s144, %s146
      %p150 = scmp.eq.s32.totalorder %s20, 0
      %p151 = por %p149, %p150
      %p152 = scmp.ne.s32.totalorder %s144, %s146
      %p153 = scmp.eq.s32.totalorder %s25, 1
      %p154 = por %p152, %p153
      %p155 = scmp.ne.s32.totalorder %s146, %s147
      %p156 = scmp.eq.s32.totalorder %s25, 0
      %p157 = por %p155, %p156
      %p158 = scmp.ne.s32.totalorder %s146, %s147
      %p159 = scmp.eq.s32.totalorder %s26, 1
      %p160 = por %p158, %p159
      %p162 = scmp.ne.s32.totalorder %s147, %s161
      %p163 = scmp.eq.s32.totalorder %s26, 0
      %p164 = por %p162, %p163
      %s166 = sadd.s32 %s165, 1
      %p169 = scmp.eq.s32.totalorder %s20, 1
      %p170 = scmp.ne.s32.totalorder %s165, %s167
      %p171 = scmp.eq.s32.totalorder %s20, 0
      %p172 = por %p170, %p171
      %p173 = scmp.ne.s32.totalorder %s165, %s167
      %p174 = scmp.eq.s32.totalorder %s25, 1
      %p175 = por %p173, %p174
      %p176 = scmp.ne.s32.totalorder %s167, %s168
      %p177 = scmp.eq.s32.totalorder %s25, 0
      %p178 = por %p176, %p177
      %p179 = scmp.ne.s32.totalorder %s167, %s168
      %p180 = scmp.eq.s32.totalorder %s26, 1
      %p181 = por %p179, %p180
      %p183 = scmp.ne.s32.totalorder %s168, %s182
      %p184 = scmp.eq.s32.totalorder %s26, 0
      %p185 = por %p183, %p184
      %s186 = ssub.s32 %s28, %s35
      %p187 = scmp.eq.s32.totalorder %s186, 0
      %s189 = sadd.s32 %s188, 1
      %s190 = scalar_select %p187, %s188, %s189
      %p193 = pneg %p187
      %p194 = scmp.eq.s32.totalorder %s20, 1
      %p195 = por %p193, %p194
      %p196 = scmp.ne.s32.totalorder %s188, %s191
      %p197 = scmp.eq.s32.totalorder %s20, 0
      %p198 = por %p196, %p197
      %p199 = scmp.ne.s32.totalorder %s188, %s191
      %p200 = scmp.eq.s32.totalorder %s25, 1
      %p201 = por %p199, %p200
      %p202 = scmp.ne.s32.totalorder %s191, %s192
      %p203 = scmp.eq.s32.totalorder %s25, 0
      %p204 = por %p202, %p203
      %p205 = scmp.ne.s32.totalorder %s191, %s192
      %p206 = scmp.eq.s32.totalorder %s26, 1
      %p207 = por %p205, %p206
      %p209 = scmp.ne.s32.totalorder %s192, %s208
      %p210 = scmp.eq.s32.totalorder %s26, 0
      %p211 = por %p209, %p210
      %s212 = ssub.s32 %s28, %s35
      %p213 = scmp.eq.s32.totalorder %s212, 0
      %s215 = sadd.s32 %s214, 1
      %s216 = scalar_select %p213, %s214, %s215
      %p219 = pneg %p213
      %p220 = scmp.eq.s32.totalorder %s20, 1
      %p221 = por %p219, %p220
      %p222 = scmp.ne.s32.totalorder %s214, %s217
      %p223 = scmp.eq.s32.totalorder %s20, 0
      %p224 = por %p222, %p223
      %p225 = scmp.ne.s32.totalorder %s214, %s217
      %p226 = scmp.eq.s32.totalorder %s25, 1
      %p227 = por %p225, %p226
      %p228 = scmp.ne.s32.totalorder %s217, %s218
      %p229 = scmp.eq.s32.totalorder %s25, 0
      %p230 = por %p228, %p229
      %p231 = scmp.ne.s32.totalorder %s217, %s218
      %p232 = scmp.eq.s32.totalorder %s26, 1
      %p233 = por %p231, %p232
      %p235 = scmp.ne.s32.totalorder %s218, %s234
      %p236 = scmp.eq.s32.totalorder %s26, 0
      %p237 = por %p235, %p236
      %s238 = ssub.s32 %s27, %s39
      %s239 = ssub.s32 %s28, %s35
      %s240 = sor.u32 %s238, %s239
      %p241 = scmp.eq.s32.totalorder %s240, 0
      %s243 = sadd.s32 %s242, 1
      %s244 = scalar_select %p241, %s242, %s243
      %p247 = pneg %p241
      %p248 = scmp.eq.s32.totalorder %s20, 1
      %p249 = por %p247, %p248
      %p250 = scmp.ne.s32.totalorder %s242, %s245
      %p251 = scmp.eq.s32.totalorder %s20, 0
      %p252 = por %p250, %p251
      %p253 = scmp.ne.s32.totalorder %s242, %s245
      %p254 = scmp.eq.s32.totalorder %s25, 1
      %p255 = por %p253, %p254
      %p256 = scmp.ne.s32.totalorder %s245, %s246
      %p257 = scmp.eq.s32.totalorder %s25, 0
      %p258 = por %p256, %p257
      %p259 = scmp.ne.s32.totalorder %s245, %s246
      %p260 = scmp.eq.s32.totalorder %s26, 1
      %p261 = por %p259, %p260
      %p263 = scmp.ne.s32.totalorder %s246, %s262
      %p264 = scmp.eq.s32.totalorder %s26, 0
      %p265 = por %p263, %p264
      %p266 = scmp.le.s32.totalorder 1, %s20
      %p267 = scmp.lt.s32.totalorder %s20, 3
      %p268 = pnand %p266, %p267
      %p269 = pneg %p268
      // Predicated region
      $region9: #{tpu_custom_call.1} parent=5 // pred_check
        _
      $region10: #{tpu_custom_call.1} parent=5 // pred_check_branch
        %271 = sbr.rel (%p268) target = $region12
      $region11: #{tpu_custom_call.1} parent=5 // pred_region
        %s272 = ssub.s32 %s20, 1
        // Predicated region
        $region13: #{tpu_custom_call.1} parent=11 // pred_check
          %p273 = pneg %p58
        $region14: #{tpu_custom_call.1} parent=11 // pred_check_branch
          %275 = sbr.rel (%p273) target = $region16
        $region15: #{tpu_custom_call.1} parent=11 // pred_region
          %277 = vsyncadd [#allocation4], 0
          %s278 = smul.addr %s29, 4
          %s279 = scalar_lea.hbm %s0, %s278
          %s281 = sshll.u32 %s279, 4
          %s282 = int_to_ptr.hbm [resolvable:$true] %s281
          %s283 = sshll.u32 [#allocation3], 4
          %s284 = int_to_ptr.vmem [resolvable:$true] %s283
          %286 = dma.hbm_to_vmem [thread:$0]  %s282, 64, %s284, [#allocation4]
        $region16: #{tpu_custom_call.1} parent=11 // pred_fallthru
          _
        // Predicated region
        $region17: #{tpu_custom_call.1} parent=11 // pred_check
          %p287 = pneg %p84
        $region18: #{tpu_custom_call.1} parent=11 // pred_check_branch
          %289 = sbr.rel (%p287) target = $region20
        $region19: #{tpu_custom_call.1} parent=11 // pred_region
          %291 = vsyncadd [#allocation7], 0
          %s292 = smul.addr %s29, 4
          %s293 = scalar_lea.hbm %s1, %s292
          %s295 = sshll.u32 %s293, 4
          %s296 = int_to_ptr.hbm [resolvable:$true] %s295
          %s297 = sshll.u32 [#allocation6], 4
          %s298 = int_to_ptr.vmem [resolvable:$true] %s297
          %300 = dma.hbm_to_vmem [thread:$0]  %s296, 64, %s298, [#allocation7]
        $region20: #{tpu_custom_call.1} parent=11 // pred_fallthru
          _
        // Predicated region
        $region21: #{tpu_custom_call.1} parent=11 // pred_check
          %p301 = pneg %p157
        $region22: #{tpu_custom_call.1} parent=11 // pred_check_branch
          %303 = sbr.rel (%p301) target = $region24
        $region23: #{tpu_custom_call.1} parent=11 // pred_region
          %305 = vsyncadd [#allocation7], 0
          %s306 = sshll.u32 %s4, 4
          %s307 = int_to_ptr.hbm [resolvable:$true] %s306
          %s308 = sshll.u32 [#allocation9], 4
          %s309 = int_to_ptr.vmem [resolvable:$true] %s308
          %314 = dma.hbm_to_vmem [thread:$0]  %s307, 256, %s309, [#allocation7], 128, 128, 8
        $region24: #{tpu_custom_call.1} parent=11 // pred_fallthru
          _
        // Predicated region
        $region25: #{tpu_custom_call.1} parent=11 // pred_check
          %p315 = pneg %p178
        $region26: #{tpu_custom_call.1} parent=11 // pred_check_branch
          %317 = sbr.rel (%p315) target = $region28
        $region27: #{tpu_custom_call.1} parent=11 // pred_region
          %319 = vsyncadd [#allocation11], 0
          %s321 = sshll.u32 %s5, 4
          %s322 = int_to_ptr.hbm [resolvable:$true] %s321
          %s323 = sshll.u32 [#allocation10], 4
          %s324 = int_to_ptr.vmem [resolvable:$true] %s323
          %326 = dma.hbm_to_vmem [thread:$0]  %s322, 32, %s324, [#allocation11]
        $region28: #{tpu_custom_call.1} parent=11 // pred_fallthru
          _
      $region12: #{tpu_custom_call.1} parent=5 // pred_fallthru
        _
      %p327 = scmp.lt.s32.totalorder %s20, 2
      // Predicated region
      $region29: #{tpu_custom_call.1} parent=5 // pred_check
        %p328 = pneg %p327
      $region30: #{tpu_custom_call.1} parent=5 // pred_check_branch
        %330 = sbr.rel (%p328) target = $region32
      $region31: #{tpu_custom_call.1} parent=5 // pred_region
        // Predicated region
        $region33: #{tpu_custom_call.1} parent=31 // pred_check
          %p331 = pneg %p104
        $region34: #{tpu_custom_call.1} parent=31 // pred_check_branch
          %333 = sbr.rel (%p331) target = $region36
        $region35: #{tpu_custom_call.1} parent=31 // pred_region
          %s334 = sand.u32 %s20, 1
          %s335 = scalar_lea.sflag [#allocation4], %s334
          %s336 = sand.u32 %s94, 1
          %s337 = smul.addr %s336, 16
          %s338 = scalar_lea.vmem [#allocation8], %s337
          %340 = vsyncadd %s335, 0
          %s341 = smul.addr %s28, 4
          %s342 = scalar_lea.hbm %s2, %s341
          %s343 = sshll.u32 %s342, 4
          %s344 = int_to_ptr.hbm [resolvable:$true] %s343
          %s345 = sshll.u32 %s338, 4
          %s346 = int_to_ptr.vmem [resolvable:$true] %s345
          %351 = dma.hbm_to_vmem [thread:$0]  %s344, 256, %s346, %s335, 128, 64, 4
        $region36: #{tpu_custom_call.1} parent=31 // pred_fallthru
          _
        // Predicated region
        $region37: #{tpu_custom_call.1} parent=31 // pred_check
          %p352 = pneg %p130
        $region38: #{tpu_custom_call.1} parent=31 // pred_check_branch
          %354 = sbr.rel (%p352) target = $region40
        $region39: #{tpu_custom_call.1} parent=31 // pred_region
          %p355 = scmp.lt.s32.totalorder %s28, 1
          %s356 = scalar_select %p355, %s28, 1
          %s357 = scalar_lea.vmem %s3, %s356
        $region40: #{tpu_custom_call.1} parent=31 // pred_fallthru
          _
        // Predicated region
        $region41: #{tpu_custom_call.1} parent=31 // pred_check
          %p358 = pneg %p198
        $region42: #{tpu_custom_call.1} parent=31 // pred_check_branch
          %360 = sbr.rel (%p358) target = $region44
        $region43: #{tpu_custom_call.1} parent=31 // pred_region
          %s361 = sand.u32 %s20, 1
          %s362 = scalar_lea.sflag [#allocation4], %s361
          %s363 = sand.u32 %s188, 1
          %s364 = smul.addr %s363, 256
          %s365 = scalar_lea.vmem [#allocation12], %s364
          %s366 = smul.u32 2, %s28
          %368 = vsyncadd %s362, 0
          %s369 = smul.addr %s366, 4
          %s370 = scalar_lea.hbm %s6, %s369
          %s371 = sshll.u32 %s370, 4
          %s372 = int_to_ptr.hbm [resolvable:$true] %s371
          %s373 = sshll.u32 %s365, 4
          %s374 = int_to_ptr.vmem [resolvable:$true] %s373
          %379 = dma.hbm_to_vmem [thread:$0]  %s372, 4096, %s374, %s362, 256, 128, 8
        $region44: #{tpu_custom_call.1} parent=31 // pred_fallthru
          _
        // Predicated region
        $region45: #{tpu_custom_call.1} parent=31 // pred_check
          %p380 = pneg %p224
        $region46: #{tpu_custom_call.1} parent=31 // pred_check_branch
          %382 = sbr.rel (%p380) target = $region48
        $region47: #{tpu_custom_call.1} parent=31 // pred_region
          %s383 = smul.u32 2, %s28
          %p384 = scmp.lt.s32.totalorder %s383, 3
          %s385 = scalar_select %p384, %s383, 3
          %s386 = scalar_lea.vmem %s7, %s385
          %s387 = smul.u32 2, %s28
        $region48: #{tpu_custom_call.1} parent=31 // pred_fallthru
          _
      $region32: #{tpu_custom_call.1} parent=5 // pred_fallthru
        _
      %p388 = scmp.le.s32.totalorder 1, %s20
      %p389 = scmp.lt.s32.totalorder %s20, 3
      %p390 = pnand %p388, %p389
      %p391 = pneg %p390
      // Predicated region
      $region49: #{tpu_custom_call.1} parent=5 // pred_check
        _
      $region50: #{tpu_custom_call.1} parent=5 // pred_check_branch
        %393 = sbr.rel (%p390) target = $region52
      $region51: #{tpu_custom_call.1} parent=5 // pred_region
        %s394 = ssub.s32 %s20, 1
        // Predicated region
        $region53: #{tpu_custom_call.1} parent=51 // pred_check
          %p395 = pneg %p58
        $region54: #{tpu_custom_call.1} parent=51 // pred_check_branch
          %397 = sbr.rel (%p395) target = $region56
        $region55: #{tpu_custom_call.1} parent=51 // pred_region
          %399 = dma.done [#allocation4], 64
        $region56: #{tpu_custom_call.1} parent=51 // pred_fallthru
          _
        // Predicated region
        $region57: #{tpu_custom_call.1} parent=51 // pred_check
          %p400 = pneg %p84
        $region58: #{tpu_custom_call.1} parent=51 // pred_check_branch
          %402 = sbr.rel (%p400) target = $region60
        $region59: #{tpu_custom_call.1} parent=51 // pred_region
          %404 = dma.done [#allocation7], 64
        $region60: #{tpu_custom_call.1} parent=51 // pred_fallthru
          _
        %s405 = sand.u32 %s25, 1
        %s406 = scalar_lea.sflag [#allocation4], %s405
        %s407 = sand.u32 %s97, 1
        %s408 = smul.addr %s407, 16
        %s409 = scalar_lea.vmem [#allocation8], %s408
        // Predicated region
        $region61: #{tpu_custom_call.1} parent=51 // pred_check
          %p410 = pneg %p110
        $region62: #{tpu_custom_call.1} parent=51 // pred_check_branch
          %412 = sbr.rel (%p410) target = $region64
        $region63: #{tpu_custom_call.1} parent=51 // pred_region
          %414 = dma.done %s406, 256
        $region64: #{tpu_custom_call.1} parent=51 // pred_fallthru
          _
        // Predicated region
        $region65: #{tpu_custom_call.1} parent=51 // pred_check
          %p415 = pneg %p157
        $region66: #{tpu_custom_call.1} parent=51 // pred_check_branch
          %417 = sbr.rel (%p415) target = $region68
        $region67: #{tpu_custom_call.1} parent=51 // pred_region
          %419 = dma.done [#allocation7], 256
        $region68: #{tpu_custom_call.1} parent=51 // pred_fallthru
          _
        // Predicated region
        $region69: #{tpu_custom_call.1} parent=51 // pred_check
          %p420 = pneg %p178
        $region70: #{tpu_custom_call.1} parent=51 // pred_check_branch
          %422 = sbr.rel (%p420) target = $region72
        $region71: #{tpu_custom_call.1} parent=51 // pred_region
          %424 = dma.done [#allocation11], 32
        $region72: #{tpu_custom_call.1} parent=51 // pred_fallthru
          _
        %s425 = sand.u32 %s25, 1
        %s426 = scalar_lea.sflag [#allocation4], %s425
        %s427 = sand.u32 %s191, 1
        %s428 = smul.addr %s427, 256
        %s429 = scalar_lea.vmem [#allocation12], %s428
        // Predicated region
        $region73: #{tpu_custom_call.1} parent=51 // pred_check
          %p430 = pneg %p204
        $region74: #{tpu_custom_call.1} parent=51 // pred_check_branch
          %432 = sbr.rel (%p430) target = $region76
        $region75: #{tpu_custom_call.1} parent=51 // pred_region
          %434 = dma.done %s426, 4096
        $region76: #{tpu_custom_call.1} parent=51 // pred_fallthru
          _
        %p435 = pneg %p58
        %p436 = pneg %p55
        %p437 = pneg %p84
        %p438 = pneg %p81
        %s439 = sand.u32 %s25, 1
        %s440 = scalar_lea.sflag [#allocation4], %s439
        %s441 = sand.u32 %s97, 1
        %s442 = smul.addr %s441, 16
        %s443 = scalar_lea.vmem [#allocation8], %s442
        %p444 = pneg %p110
        %p445 = pneg %p107
        %p446 = scmp.lt.s32.totalorder %s30, 1
        %s447 = scalar_select %p446, %s30, 1
        %s448 = scalar_lea.vmem %s3, %s447
        %p449 = pneg %p136
        %p450 = pneg %p133
        %p451 = pneg %p157
        %p452 = pneg %p154
        %p453 = pneg %p178
        %p454 = pneg %p175
        %s455 = sand.u32 %s25, 1
        %s456 = scalar_lea.sflag [#allocation4], %s455
        %s457 = sand.u32 %s191, 1
        %s458 = smul.addr %s457, 256
        %s459 = scalar_lea.vmem [#allocation12], %s458
        %p460 = pneg %p204
        %p461 = pneg %p201
        %s462 = smul.u32 2, %s30
        %p463 = scmp.lt.s32.totalorder %s462, 3
        %s464 = scalar_select %p463, %s462, 3
        %s465 = scalar_lea.vmem %s7, %s464
        %p466 = pneg %p230
        %p467 = pneg %p227
        %p468 = pneg %p258
        %p469 = pneg %p255
        %s470 = sand.u32 %s245, 1
        %s471 = scalar_lea.sflag [#allocation5], %s470
        %s472 = sand.u32 %s245, 1
        %s473 = smul.addr %s472, 8
        %s474 = scalar_lea.vmem [#allocation13], %s473
        %p475 = scmp.lt.s32.totalorder %s30, 1
        %s476 = scalar_select %p475, %s30, 1
        %s477 = scalar_lea.vmem %s3, %s476
        %s478 = smul.u32 2, %s30
        %s479 = smul.u32 2, %s30
        %p480 = scmp.lt.s32.totalorder %s479, 3
        %s481 = scalar_select %p480, %s479, 3
        %s482 = scalar_lea.vmem %s7, %s481
        %s483 = smul.u32 2, %s30
        %p485 = scmp.eq.s32.totalorder %s30, 0
        // Predicated region
        $region77: #{tpu_custom_call.1} parent=51 // pred_check
          %p486 = pneg %p485
        $region78: #{tpu_custom_call.1} parent=51 // pred_check_branch
          %488 = sbr.rel (%p486) target = $region80
        $region79: #{tpu_custom_call.1} parent=51 // pred_region
          %v489 = vld [vmem:[#allocation6] sm:$0xf]
          %v490 = vld [vmem:[#allocation9] sm:$0xff]
          %v491 = vld [vmem:[#allocation9 + $0x8] sm:$0xff]
          %v492 = vld [vmem:[#allocation10] sm:$0x3]
          %v494 = vperm.slane %v492, 0
          %v495 = vperm.slane %v492, 1
          %v500 = vunpack.c.l.b16 %v490
          %v501 = vunpack.c.h.b16 %v490
          %v502 = vunpack.c.l.b16 %v491
          %v503 = vunpack.c.h.b16 %v491
          %v504 = vpack.c.b16 %v502, %v500
          %v505 = vpack.c.b16 %v503, %v501
          %vm508 = vcmask 130048
          %v510 = vsel %vm508, %v489, 0
          %512 = vmatpush.bf16.msra.mxu0 0
          %513 = vmatpush.bf16.msra.mxu0 0
          %514 = vmatpush.bf16.msra.mxu0 0
          %515 = vmatpush.bf16.msra.mxu0 0
          %516 = vmatpush.bf16.msra.mxu0 0
          %517 = vmatpush.bf16.msra.mxu0 0
          %518 = vmatpush.bf16.msra.mxu0 0
          %519 = vmatpush.bf16.msra.mxu0 %v504
          %520 = vmatmul.bf16.gmra.mxu0 %v510
          %v521 = vpop.f32.mrf.mxu0
          %v522 = vadd.f32 %v494, %v521
          %v523 = vpop.f32.mrf.mxu0
          %524 = vdwg.mxu0
          %525 = vmatpush.bf16.msra.mxu0 0
          %526 = vmatpush.bf16.msra.mxu0 0
          %527 = vmatpush.bf16.msra.mxu0 0
          %528 = vmatpush.bf16.msra.mxu0 0
          %529 = vmatpush.bf16.msra.mxu0 0
          %530 = vmatpush.bf16.msra.mxu0 0
          %531 = vmatpush.bf16.msra.mxu0 0
          %532 = vmatpush.bf16.msra.mxu0 %v505
          %533 = vmatmul.bf16.gmra.mxu0 %v510
          %v534 = vpop.f32.mrf.mxu0
          %v535 = vadd.f32 %v495, %v534
          %v536 = vpop.f32.mrf.mxu0
          %537 = vdwg.mxu0
          %v538 = vmax.f32 %v522, 0.0
          %v539 = vmax.f32 %v535, 0.0
          %v540 = vpack.c.bf16 %v539, %v538
          %541 = vst [vmem:[#allocation2] sm:$0xff] %v540
        $region80: #{tpu_custom_call.1} parent=51 // pred_fallthru
          _
        %v542 = vld [vmem:[#allocation3] sm:$0xf]
        %v543 = vld [vmem:[%s409] sm:$0xf]
        %v544 = vld [vmem:[%s409 + $0x4] sm:$0xf]
        %v545 = vld [vmem:[%s409 + $0x8] sm:$0xf]
        %v546 = vld [vmem:[%s409 + $0xc] sm:$0xf]
        %v547 = vld [vmem:[%s477] sm:$0x1]
        %v549 = vperm.slane %v547, 0
        %v555 = vunpack.c.l.b16 %v543
        %v556 = vunpack.c.l.b16 %v544
        %v557 = vunpack.c.l.b16 %v545
        %v558 = vunpack.c.l.b16 %v546
        %v559 = vpack.c.b16 %v556, %v555
        %v560 = vpack.c.b16 %v558, %v557
        %vm563 = vcmask 261120
        %v565 = vsel %vm563, %v542, 0
        %567 = vmatpush.bf16.msra.mxu0 0
        %568 = vmatpush.bf16.msra.mxu0 0
        %569 = vmatpush.bf16.msra.mxu0 0
        %570 = vmatpush.bf16.msra.mxu0 0
        %571 = vmatpush.bf16.msra.mxu0 0
        %572 = vmatpush.bf16.msra.mxu0 0
        %573 = vmatpush.bf16.msra.mxu0 %v560
        %574 = vmatpush.bf16.msra.mxu0 %v559
        %575 = vmatmul.bf16.gmra.mxu0 %v565
        %v576 = vpop.f32.mrf.mxu0
        %v577 = vadd.f32 %v549, %v576
        %v578 = vpop.f32.mrf.mxu0
        %579 = vdwg.mxu0
        %v580 = vld [vmem:[#allocation2] sm:$0xff]
        %v581 = vld [vmem:[%s429] sm:$0xff]
        %v582 = vld [vmem:[%s429 + $0x8] sm:$0xff]
        %v583 = vld [vmem:[%s429 + $0x10] sm:$0xff]
        %v584 = vld [vmem:[%s429 + $0x18] sm:$0xff]
        %v585 = vld [vmem:[%s429 + $0x20] sm:$0xff]
        %v586 = vld [vmem:[%s429 + $0x28] sm:$0xff]
        %v587 = vld [vmem:[%s429 + $0x30] sm:$0xff]
        %v588 = vld [vmem:[%s429 + $0x38] sm:$0xff]
        %v589 = vld [vmem:[%s429 + $0x40] sm:$0xff]
        %v590 = vld [vmem:[%s429 + $0x48] sm:$0xff]
        %v591 = vld [vmem:[%s429 + $0x50] sm:$0xff]
        %v592 = vld [vmem:[%s429 + $0x58] sm:$0xff]
        %v593 = vld [vmem:[%s429 + $0x60] sm:$0xff]
        %v594 = vld [vmem:[%s429 + $0x68] sm:$0xff]
        %v595 = vld [vmem:[%s429 + $0x70] sm:$0xff]
        %v596 = vld [vmem:[%s429 + $0x78] sm:$0xff]
        %v597 = vld [vmem:[%s429 + $0x80] sm:$0xff]
        %v598 = vld [vmem:[%s429 + $0x88] sm:$0xff]
        %v599 = vld [vmem:[%s429 + $0x90] sm:$0xff]
        %v600 = vld [vmem:[%s429 + $0x98] sm:$0xff]
        %v601 = vld [vmem:[%s429 + $0xa0] sm:$0xff]
        %v602 = vld [vmem:[%s429 + $0xa8] sm:$0xff]
        %v603 = vld [vmem:[%s429 + $0xb0] sm:$0xff]
        %v604 = vld [vmem:[%s429 + $0xb8] sm:$0xff]
        %v605 = vld [vmem:[%s429 + $0xc0] sm:$0xff]
        %v606 = vld [vmem:[%s429 + $0xc8] sm:$0xff]
        %v607 = vld [vmem:[%s429 + $0xd0] sm:$0xff]
        %v608 = vld [vmem:[%s429 + $0xd8] sm:$0xff]
        %v609 = vld [vmem:[%s429 + $0xe0] sm:$0xff]
        %v610 = vld [vmem:[%s429 + $0xe8] sm:$0xff]
        %v611 = vld [vmem:[%s429 + $0xf0] sm:$0xff]
        %v612 = vld [vmem:[%s429 + $0xf8] sm:$0xff]
        %v613 = vld [vmem:[%s482] sm:$0x3]
        %v615 = vperm.slane %v613, 0
        %v616 = vperm.slane %v613, 1
        %v620 = vunpack.c.l.b16 %v580
        %v621 = vunpack.c.h.b16 %v580
        %v622 = vpack.c.b16 %v620, %v620
        %v623 = vpack.c.b16 %v621, %v621
        %v658 = vunpack.c.l.b16 %v581
        %v659 = vunpack.c.h.b16 %v581
        %v660 = vunpack.c.l.b16 %v582
        %v661 = vunpack.c.h.b16 %v582
        %v662 = vunpack.c.l.b16 %v583
        %v663 = vunpack.c.h.b16 %v583
        %v664 = vunpack.c.l.b16 %v584
        %v665 = vunpack.c.h.b16 %v584
        %v666 = vunpack.c.l.b16 %v585
        %v667 = vunpack.c.h.b16 %v585
        %v668 = vunpack.c.l.b16 %v586
        %v669 = vunpack.c.h.b16 %v586
        %v670 = vunpack.c.l.b16 %v587
        %v671 = vunpack.c.h.b16 %v587
        %v672 = vunpack.c.l.b16 %v588
        %v673 = vunpack.c.h.b16 %v588
        %v674 = vunpack.c.l.b16 %v589
        %v675 = vunpack.c.h.b16 %v589
        %v676 = vunpack.c.l.b16 %v590
        %v677 = vunpack.c.h.b16 %v590
        %v678 = vunpack.c.l.b16 %v591
        %v679 = vunpack.c.h.b16 %v591
        %v680 = vunpack.c.l.b16 %v592
        %v681 = vunpack.c.h.b16 %v592
        %v682 = vunpack.c.l.b16 %v593
        %v683 = vunpack.c.h.b16 %v593
        %v684 = vunpack.c.l.b16 %v594
        %v685 = vunpack.c.h.b16 %v594
        %v686 = vunpack.c.l.b16 %v595
        %v687 = vunpack.c.h.b16 %v595
        %v688 = vunpack.c.l.b16 %v596
        %v689 = vunpack.c.h.b16 %v596
        %v690 = vunpack.c.l.b16 %v597
        %v691 = vunpack.c.h.b16 %v597
        %v692 = vunpack.c.l.b16 %v598
        %v693 = vunpack.c.h.b16 %v598
        %v694 = vunpack.c.l.b16 %v599
        %v695 = vunpack.c.h.b16 %v599
        %v696 = vunpack.c.l.b16 %v600
        %v697 = vunpack.c.h.b16 %v600
        %v698 = vunpack.c.l.b16 %v601
        %v699 = vunpack.c.h.b16 %v601
        %v700 = vunpack.c.l.b16 %v602
        %v701 = vunpack.c.h.b16 %v602
        %v702 = vunpack.c.l.b16 %v603
        %v703 = vunpack.c.h.b16 %v603
        %v704 = vunpack.c.l.b16 %v604
        %v705 = vunpack.c.h.b16 %v604
        %v706 = vunpack.c.l.b16 %v605
        %v707 = vunpack.c.h.b16 %v605
        %v708 = vunpack.c.l.b16 %v606
        %v709 = vunpack.c.h.b16 %v606
        %v710 = vunpack.c.l.b16 %v607
        %v711 = vunpack.c.h.b16 %v607
        %v712 = vunpack.c.l.b16 %v608
        %v713 = vunpack.c.h.b16 %v608
        %v714 = vunpack.c.l.b16 %v609
        %v715 = vunpack.c.h.b16 %v609
        %v716 = vunpack.c.l.b16 %v610
        %v717 = vunpack.c.h.b16 %v610
        %v718 = vunpack.c.l.b16 %v611
        %v719 = vunpack.c.h.b16 %v611
        %v720 = vunpack.c.l.b16 %v612
        %v721 = vunpack.c.h.b16 %v612
        %v722 = vpack.c.b16 %v660, %v658
        %v723 = vpack.c.b16 %v661, %v659
        %v724 = vpack.c.b16 %v664, %v662
        %v725 = vpack.c.b16 %v665, %v663
        %v726 = vpack.c.b16 %v668, %v666
        %v727 = vpack.c.b16 %v669, %v667
        %v728 = vpack.c.b16 %v672, %v670
        %v729 = vpack.c.b16 %v673, %v671
        %v730 = vpack.c.b16 %v676, %v674
        %v731 = vpack.c.b16 %v677, %v675
        %v732 = vpack.c.b16 %v680, %v678
        %v733 = vpack.c.b16 %v681, %v679
        %v734 = vpack.c.b16 %v684, %v682
        %v735 = vpack.c.b16 %v685, %v683
        %v736 = vpack.c.b16 %v688, %v686
        %v737 = vpack.c.b16 %v689, %v687
        %v738 = vpack.c.b16 %v692, %v690
        %v739 = vpack.c.b16 %v693, %v691
        %v740 = vpack.c.b16 %v696, %v694
        %v741 = vpack.c.b16 %v697, %v695
        %v742 = vpack.c.b16 %v700, %v698
        %v743 = vpack.c.b16 %v701, %v699
        %v744 = vpack.c.b16 %v704, %v702
        %v745 = vpack.c.b16 %v705, %v703
        %v746 = vpack.c.b16 %v708, %v706
        %v747 = vpack.c.b16 %v709, %v707
        %v748 = vpack.c.b16 %v712, %v710
        %v749 = vpack.c.b16 %v713, %v711
        %v750 = vpack.c.b16 %v716, %v714
        %v751 = vpack.c.b16 %v717, %v715
        %v752 = vpack.c.b16 %v720, %v718
        %v753 = vpack.c.b16 %v721, %v719
        %786 = vmatpush.bf16.msra.mxu0 %v736
        %787 = vmatpush.bf16.msra.mxu0 %v734
        %788 = vmatpush.bf16.msra.mxu0 %v732
        %789 = vmatpush.bf16.msra.mxu0 %v730
        %790 = vmatpush.bf16.msra.mxu0 %v728
        %791 = vmatpush.bf16.msra.mxu0 %v726
        %792 = vmatpush.bf16.msra.mxu0 %v724
        %793 = vmatpush.bf16.msra.mxu0 %v722
        %794 = vmatmul.bf16.gmra.mxu0 %v622
        %v795 = vpop.f32.mrf.mxu0
        %v796 = vadd.f32 %v615, %v795
        %v797 = vpop.f32.mrf.mxu0
        %798 = vdwg.mxu0
        %799 = vmatpush.bf16.msra.mxu0 %v752
        %800 = vmatpush.bf16.msra.mxu0 %v750
        %801 = vmatpush.bf16.msra.mxu0 %v748
        %802 = vmatpush.bf16.msra.mxu0 %v746
        %803 = vmatpush.bf16.msra.mxu0 %v744
        %804 = vmatpush.bf16.msra.mxu0 %v742
        %805 = vmatpush.bf16.msra.mxu0 %v740
        %806 = vmatpush.bf16.msra.mxu0 %v738
        %807 = vmatmul.bf16.gmra.mxu0 %v623
        %v808 = vpop.f32.mrf.mxu0
        %v809 = vadd.f32 %v796, %v808
        %v810 = vpop.f32.mrf.mxu0
        %811 = vdwg.mxu0
        %812 = vmatpush.bf16.msra.mxu0 %v737
        %813 = vmatpush.bf16.msra.mxu0 %v735
        %814 = vmatpush.bf16.msra.mxu0 %v733
        %815 = vmatpush.bf16.msra.mxu0 %v731
        %816 = vmatpush.bf16.msra.mxu0 %v729
        %817 = vmatpush.bf16.msra.mxu0 %v727
        %818 = vmatpush.bf16.msra.mxu0 %v725
        %819 = vmatpush.bf16.msra.mxu0 %v723
        %820 = vmatmul.bf16.gmra.mxu0 %v622
        %v821 = vpop.f32.mrf.mxu0
        %v822 = vadd.f32 %v616, %v821
        %v823 = vpop.f32.mrf.mxu0
        %824 = vdwg.mxu0
        %825 = vmatpush.bf16.msra.mxu0 %v753
        %826 = vmatpush.bf16.msra.mxu0 %v751
        %827 = vmatpush.bf16.msra.mxu0 %v749
        %828 = vmatpush.bf16.msra.mxu0 %v747
        %829 = vmatpush.bf16.msra.mxu0 %v745
        %830 = vmatpush.bf16.msra.mxu0 %v743
        %831 = vmatpush.bf16.msra.mxu0 %v741
        %832 = vmatpush.bf16.msra.mxu0 %v739
        %833 = vmatmul.bf16.gmra.mxu0 %v623
        %v834 = vpop.f32.mrf.mxu0
        %v835 = vadd.f32 %v822, %v834
        %v836 = vpop.f32.mrf.mxu0
        %837 = vdwg.mxu0
        %v838 = vmul.f32 %v809, %v577
        %v839 = vadd.f32 %v838, %v835
        %840 = vst [vmem:[%s474] sm:$0xff] %v839
        %s841 = sand.u32 %s245, 1
        %s842 = scalar_lea.sflag [#allocation5], %s841
        %s843 = sand.u32 %s245, 1
        %s844 = smul.addr %s843, 8
        %s845 = scalar_lea.vmem [#allocation13], %s844
        // Predicated region
        $region81: #{tpu_custom_call.1} parent=51 // pred_check
          %p846 = pneg %p255
        $region82: #{tpu_custom_call.1} parent=51 // pred_check_branch
          %848 = sbr.rel (%p846) target = $region84
        $region83: #{tpu_custom_call.1} parent=51 // pred_region
          %850 = vsyncadd %s842, 0
          %s851 = smul.addr %s29, 2
          %s852 = sadd.s32 %s30, %s851
          %s853 = smul.addr %s852, 8
          %s854 = scalar_lea.hbm %s8, %s853
          %s856 = sshll.u32 %s845, 4
          %s857 = int_to_ptr.vmem [resolvable:$true] %s856
          %s858 = sshll.u32 %s854, 4
          %s859 = int_to_ptr.hbm [resolvable:$true] %s858
          %861 = dma.vmem_to_hbm [thread:$0]  %s857, 128, %s859, %s842
        $region84: #{tpu_custom_call.1} parent=51 // pred_fallthru
          _
      $region52: #{tpu_custom_call.1} parent=5 // pred_fallthru
        _
      %p862 = scmp.le.s32.totalorder 2, %s20
      // Predicated region
      $region85: #{tpu_custom_call.1} parent=5 // pred_check
        %p863 = pneg %p862
      $region86: #{tpu_custom_call.1} parent=5 // pred_check_branch
        %865 = sbr.rel (%p863) target = $region88
      $region87: #{tpu_custom_call.1} parent=5 // pred_region
        %s866 = ssub.s32 %s20, 2
        // Predicated region
        $region89: #{tpu_custom_call.1} parent=87 // pred_check
          %p867 = pneg %p261
        $region90: #{tpu_custom_call.1} parent=87 // pred_check_branch
          %869 = sbr.rel (%p867) target = $region92
        $region91: #{tpu_custom_call.1} parent=87 // pred_region
          %s870 = sand.u32 %s246, 1
          %s871 = scalar_lea.sflag [#allocation5], %s870
          %s872 = sand.u32 %s246, 1
          %s873 = smul.addr %s872, 8
          %s874 = scalar_lea.vmem [#allocation13], %s873
          %876 = dma.done %s871, 128
        $region92: #{tpu_custom_call.1} parent=87 // pred_fallthru
          _
      $region88: #{tpu_custom_call.1} parent=5 // pred_fallthru
        _
    $region6: #{tpu_custom_call.1} parent=1 // loop_footer
      %s24 = sadd.s32 1, %s20
    $region7: #{tpu_custom_call.1} parent=1 // loop_footer_branch
      %19 = sbr.rel target = $region3
    $region8: #{tpu_custom_call.1} parent=1 // loop_exit
      _
    %877 = vsyncpa [#allocation4], 1
    %s878 = scalar_lea.sflag [#allocation4], 1
    %879 = vsyncpa %s878, 1
    %880 = vsyncpa [#allocation7], 1
    %881 = vsyncpa [#allocation11], 1
    %882 = vsyncpa [#allocation5], 1
    %s883 = scalar_lea.sflag [#allocation5], 1
    %884 = vsyncpa %s883, 1

</llo_original>
